<compile_context>
chip_gen: v7x
topology: tpu7x:2x2x1
jax: 0.10.0
libtpu: 0.0.40
codegen_flags: <defaults>
</compile_context>

<pallas_src>
import math
import functools

import jax
import jax.numpy as jnp
from jax import lax
from jax.experimental import pallas as pl
from jax.experimental.pallas import tpu as pltpu


def _round_up(x, m):
    return ((x + m - 1) // m) * m


def _cdiv(a, b):
    return (a + b - 1) // b


def _sublane_multiple(dtype):
    return {4: 8, 2: 16, 1: 32}.get(jnp.dtype(dtype).itemsize, 8)


def _vmem_capacity_bytes():
    try:
        return int(pltpu.get_tpu_info().vmem_capacity_bytes)
    except Exception:
        return 64 << 20  # conservative (v7x-sized) fallback


def _is_dual_tensorcore_chip():
    try:
        return "v7" in jax.devices()[0].device_kind.lower()
    except Exception:
        return False


def _footprint(tm, tk, hidden, sx, sw, so):
    return (2 * tm * tk * sx          # x tile, double-buffered
            + 2 * tk * hidden * sw    # weight K tile, double-buffered
            + 2 * tm * hidden * so    # output tile, double-buffered
            + tm * hidden * 4         # f32 accumulator scratch
            + 6 * hidden * 4)         # bias / gamma / beta

# TODO(synk): when (tm, H) f32 acc + double-buffered output no longer fits even at the
# smallest tiles (very large H on v7x), split into matmul+GELU (3-D grid, N-tiled) and a
# separate row-wise LayerNorm kernel; also consider pipeline_mode=pl.Buffered(1) on the
# output spec (it only changes per row tile) to recover tm*H bytes of VMEM.


def _pick_tiles(rows, hidden, sx, sw, so, budget, sublane):
    row_cap = _round_up(rows, sublane)
    tm_cands = sorted(
        {t for t in (1024, 768, 512, 384, 256, 128) if t <= row_cap}
        | ({row_cap} if row_cap <= 1024 else set()),
        reverse=True) or [row_cap]
    tk_cands = [t for t in (1024, 512, 256, 128) if hidden % t == 0] or [hidden]
    # Prefer the largest row tile (weight-streaming arithmetic intensity); shrink the
    # K tile before shrinking tm, since tk does not change HBM traffic.
    for tm in tm_cands:
        for tk in tk_cands:
            if _footprint(tm, tk, hidden, sx, sw, so) <= budget:
                return tm, tk
    return tm_cands[-1], tk_cands[-1]


def _decoder_transform_kernel(x_ref, w_ref, b_ref, gamma_ref, beta_ref, o_ref, acc_ref):
    # x_ref: (tm, tk)  w_ref: (tk, H)  b/gamma/beta: (1, H)  o_ref: (tm, H)  acc: (tm, H) f32
    k = pl.program_id(1)
    nk = pl.num_programs(1)

    @pl.when(k == 0)
    def _():
        acc_ref[...] = jnp.zeros_like(acc_ref)

    # MXU matmul in the operands' native dtype (bf16-friendly), f32 accumulation.
    partial = jnp.dot(x_ref[...], w_ref[...], preferred_element_type=jnp.float32)

    @pl.when(k < nk - 1)
    def _():
        acc_ref[...] += partial

    @pl.when(k == nk - 1)
    def _():
        # Final partial stays in registers: no acc store+reload on the last step.
        h = acc_ref[...] + partial + b_ref[...].astype(jnp.float32)

        # Exact (erf-based) GELU, matching the BERT-style gelu used in the module.
        h = 0.5 * h * (1.0 + lax.erf(h * (1.0 / math.sqrt(2.0))))

        # LayerNorm over the hidden axis, eps=1e-12; single-pass stats with var clamp.
        inv_h = 1.0 / float(h.shape[-1])
        s = jnp.sum(h, axis=-1, keepdims=True)
        ss = jnp.sum(h * h, axis=-1, keepdims=True)
        mean = s * inv_h
        var = jnp.maximum(ss * inv_h - mean * mean, 0.0)
        normed = (h - mean) * lax.rsqrt(var + 1e-12)

        out = normed * gamma_ref[...].astype(jnp.float32) + beta_ref[...].astype(jnp.float32)
        o_ref[...] = out.astype(o_ref.dtype)


@functools.partial(jax.jit, static_argnames=("compute_dtype",))
def decoder_transform(hidden_states, w_t, b, gamma, beta, compute_dtype=None):
    """hidden_states: [..., H]; w_t: [H, H] (nn.Linear weight pre-transposed); b/gamma/beta: [H].

    compute_dtype: optional dtype (e.g. jnp.bfloat16) to cast x / w_t to before the MXU
    matmul (f32 accumulation, f32 epilogue, output keeps the input dtype).
    """
    orig_shape = hidden_states.shape
    hidden = orig_shape[-1]
    assert w_t.shape == (hidden, hidden)

    x = hidden_states.reshape(-1, hidden)
    rows = x.shape[0]
    out_dtype = hidden_states.dtype

    if compute_dtype is not None:
        x = x.astype(compute_dtype)
        w_t = w_t.astype(compute_dtype)

    sx = jnp.dtype(x.dtype).itemsize
    sw = jnp.dtype(w_t.dtype).itemsize
    so = jnp.dtype(out_dtype).itemsize
    sublane = _sublane_multiple(x.dtype)

    vmem_cap = _vmem_capacity_bytes()
    budget = max(vmem_cap - (16 << 20), 32 << 20)   # headroom for Mosaic internal scratch

    tm, tk = _pick_tiles(rows, hidden, sx, sw, so, budget, sublane)

    # Feed both TensorCores on dual-TC chips: force >= 2 row tiles when rows allow it.
    if _is_dual_tensorcore_chip() and _cdiv(rows, tm) < 2 and rows > 2 * sublane:
        tm = max(_round_up(_cdiv(rows, 2), sublane), sublane)

    grid = (_cdiv(rows, tm), _cdiv(hidden, tk))

    vmem_limit = int(1.25 * _footprint(tm, tk, hidden, sx, sw, so)) + (2 << 20)
    vmem_limit = min(max(vmem_limit, 32 << 20), budget)

    # Keep 1-D params as (1, H) for TPU-friendly 2-D layouts.
    b2 = b.reshape(1, hidden)
    g2 = gamma.reshape(1, hidden)
    be2 = beta.reshape(1, hidden)

    out = pl.pallas_call(
        _decoder_transform_kernel,
        out_shape=jax.ShapeDtypeStruct((rows, hidden), out_dtype),
        grid_spec=pltpu.PrefetchScalarGridSpec(
            num_scalar_prefetch=0,
            grid=grid,
            in_specs=[
                pl.BlockSpec((tm, tk), lambda i, k: (i, k)),       # x row/K tile
                pl.BlockSpec((tk, hidden), lambda i, k: (k, 0)),   # weight K tile
                pl.BlockSpec((1, hidden), lambda i, k: (0, 0)),    # bias (grid-invariant)
                pl.BlockSpec((1, hidden), lambda i, k: (0, 0)),    # LN gamma
                pl.BlockSpec((1, hidden), lambda i, k: (0, 0)),    # LN beta
            ],
            out_specs=pl.BlockSpec((tm, hidden), lambda i, k: (i, 0)),
            scratch_shapes=[pltpu.VMEM((tm, hidden), jnp.float32)],
        ),
        compiler_params=pltpu.CompilerParams(
            dimension_semantics=("parallel", "arbitrary"),
            vmem_limit_bytes=vmem_limit,
        ),
    )(x, w_t, b2, g2, be2)

    return out.reshape(orig_shape)


def reference(x, w_t, b, gamma, beta):
    h = x @ w_t + b
    h = 0.5 * h * (1.0 + lax.erf(h / jnp.sqrt(2.0)))
    mean = jnp.mean(h, axis=-1, keepdims=True)
    var = jnp.mean((h - mean) ** 2, axis=-1, keepdims=True)
    h = (h - mean) / jnp.sqrt(var + 1e-12)
    return h * gamma + beta


if __name__ == "__main__":
    key = jax.random.PRNGKey(0)
    batch, seq, hidden = 2, 8, 32

    k_x, k_w, k_b = jax.random.split(key, 3)
    hidden_states = jax.random.normal(k_x, (batch, seq, hidden), dtype=jnp.float32)

    # Deterministic "Linear(hidden, hidden)" params: weight [out, in], bias [out].
    weight = jax.random.normal(k_w, (hidden, hidden), dtype=jnp.float32) * (1.0 / math.sqrt(hidden))
    bias = jax.random.normal(k_b, (hidden,), dtype=jnp.float32) * 0.02
    # LayerNorm params: default init gamma=1, beta=0.
    gamma = jnp.ones((hidden,), dtype=jnp.float32)
    beta = jnp.zeros((hidden,), dtype=jnp.float32)

    w_t = weight.T  # [in, out] so the kernel computes x @ w_t (+ b) == nn.Linear

    # --- f32 path: exact semantics of the PyTorch module ---
    out = decoder_transform(hidden_states, w_t, bias, gamma, beta)
    jax.block_until_ready(out)
    ref = reference(hidden_states.reshape(-1, hidden), w_t, bias, gamma, beta)
    ref = ref.reshape(hidden_states.shape)
    assert jnp.allclose(out, ref, atol=2e-5, rtol=2e-5), "f32 mismatch vs reference"

    # --- bf16 compute path (perf recommendation: half weight HBM traffic, full MXU rate) ---
    out_bf16 = decoder_transform(hidden_states, w_t, bias, gamma, beta,
                                 compute_dtype=jnp.bfloat16)
    jax.block_until_ready(out_bf16)
    ref_bf16 = reference(
        hidden_states.reshape(-1, hidden).astype(jnp.bfloat16).astype(jnp.float32),
        w_t.astype(jnp.bfloat16).astype(jnp.float32),
        bias, gamma, beta).reshape(hidden_states.shape)
    assert jnp.allclose(out_bf16, ref_bf16, atol=2e-2, rtol=2e-2), "bf16 mismatch vs reference"

    print("KERNEL_OK")
</pallas_src>

<mosaic_0001>
module attributes {stable_mosaic.version = 11 : i64} {
  func.func @_decoder_transform_kernel(%arg0: i32, %arg1: i32, %arg2: memref<16x32xf32, #tpu.memory_space<vmem>>, %arg3: memref<32x32xf32, #tpu.memory_space<vmem>>, %arg4: memref<1x32xf32, #tpu.memory_space<vmem>>, %arg5: memref<1x32xf32, #tpu.memory_space<vmem>>, %arg6: memref<1x32xf32, #tpu.memory_space<vmem>>, %arg7: memref<16x32xf32, #tpu.memory_space<vmem>>, %arg8: memref<16x32xf32, #tpu.memory_space<vmem>>) attributes {dimension_semantics = [#tpu.dimension_semantics<parallel>, #tpu.dimension_semantics<arbitrary>], iteration_bounds = array<i64: 1, 1>, scalar_prefetch = 0 : i64, scratch_operands = 1 : i64, tpu.core_type = #tpu.core_type<tc>, window_params = [{transform_indices = @transform_0, window_bounds = array<i64: 16, 32>}, {transform_indices = @transform_1, window_bounds = array<i64: 32, 32>}, {pipeline_mode = #tpu.pipeline_mode<synchronous>, transform_indices = @transform_2, window_bounds = array<i64: 1, 32>}, {pipeline_mode = #tpu.pipeline_mode<synchronous>, transform_indices = @transform_3, window_bounds = array<i64: 1, 32>}, {pipeline_mode = #tpu.pipeline_mode<synchronous>, transform_indices = @transform_4, window_bounds = array<i64: 1, 32>}, {transform_indices = @transform_5, window_bounds = array<i64: 16, 32>}]} {
    %c0_i32 = arith.constant 0 : i32
    %0 = arith.cmpi eq, %arg1, %c0_i32 : i32
    %1 = arith.extui %0 : i1 to i32
    %c0_i32_0 = arith.constant 0 : i32
    %2 = arith.cmpi ne, %1, %c0_i32_0 : i32
    scf.if %2 {
      %cst_8 = arith.constant 0.000000e+00 : f32
      %12 = vector.broadcast %cst_8 : f32 to vector<16x32xf32>
      %c0_9 = arith.constant 0 : index
      %c0_10 = arith.constant 0 : index
      %13 = vector.load %arg8[%c0_9, %c0_10] : memref<16x32xf32, #tpu.memory_space<vmem>>, vector<16x32xf32>
      tpu.vector_store %arg8[%c0_9, %c0_10], %12 {strides = array<i32>} : memref<16x32xf32, #tpu.memory_space<vmem>>, vector<16x32xf32>,
    } else {
    }
    %c0 = arith.constant 0 : index
    %c0_1 = arith.constant 0 : index
    %3 = vector.load %arg2[%c0, %c0_1] : memref<16x32xf32, #tpu.memory_space<vmem>>, vector<16x32xf32>
    %c0_2 = arith.constant 0 : index
    %c0_3 = arith.constant 0 : index
    %4 = vector.load %arg3[%c0_2, %c0_3] : memref<32x32xf32, #tpu.memory_space<vmem>>, vector<32x32xf32>
    %cst = arith.constant dense<0.000000e+00> : vector<16x32xf32>
    %5 = tpu.matmul %3, %4, %cst {dimension_numbers = #tpu.dot_dimension_numbers<[1], [0], [0], [1], [0, 0, 1, 1], [], []>} : vector<16x32xf32>, vector<32x32xf32>, vector<16x32xf32> -> vector<16x32xf32>
    %c0_i32_4 = arith.constant 0 : i32
    %6 = arith.cmpi slt, %arg1, %c0_i32_4 : i32
    %7 = arith.extui %6 : i1 to i32
    %c0_i32_5 = arith.constant 0 : i32
    %8 = arith.cmpi ne, %7, %c0_i32_5 : i32
    scf.if %8 {
      %c0_8 = arith.constant 0 : index
      %c0_9 = arith.constant 0 : index
      %12 = vector.load %arg8[%c0_8, %c0_9] : memref<16x32xf32, #tpu.memory_space<vmem>>, vector<16x32xf32>
      %13 = arith.addf %12, %5 : vector<16x32xf32>
      %c0_10 = arith.constant 0 : index
      %c0_11 = arith.constant 0 : index
      %14 = vector.load %arg8[%c0_10, %c0_11] : memref<16x32xf32, #tpu.memory_space<vmem>>, vector<16x32xf32>
      tpu.vector_store %arg8[%c0_10, %c0_11], %13 {strides = array<i32>} : memref<16x32xf32, #tpu.memory_space<vmem>>, vector<16x32xf32>,
    } else {
    }
    %c0_i32_6 = arith.constant 0 : i32
    %9 = arith.cmpi eq, %arg1, %c0_i32_6 : i32
    %10 = arith.extui %9 : i1 to i32
    %c0_i32_7 = arith.constant 0 : i32
    %11 = arith.cmpi ne, %10, %c0_i32_7 : i32
    scf.if %11 {
      %c0_8 = arith.constant 0 : index
      %c0_9 = arith.constant 0 : index
      %12 = vector.load %arg8[%c0_8, %c0_9] : memref<16x32xf32, #tpu.memory_space<vmem>>, vector<16x32xf32>
      %13 = arith.addf %12, %5 : vector<16x32xf32>
      %c0_10 = arith.constant 0 : index
      %c0_11 = arith.constant 0 : index
      %14 = vector.load %arg4[%c0_10, %c0_11] : memref<1x32xf32, #tpu.memory_space<vmem>>, vector<1x32xf32>
      %15 = vector.broadcast %14 : vector<1x32xf32> to vector<16x32xf32>
      %16 = arith.addf %13, %15 : vector<16x32xf32>
      %cst_12 = arith.constant 5.000000e-01 : f32
      %17 = vector.broadcast %cst_12 : f32 to vector<16x32xf32>
      %18 = arith.mulf %17, %16 : vector<16x32xf32>
      %cst_13 = arith.constant 0.707106769 : f32
      %19 = vector.broadcast %cst_13 : f32 to vector<16x32xf32>
      %20 = arith.mulf %16, %19 : vector<16x32xf32>
      %21 = math.erf %20 : vector<16x32xf32>
      %cst_14 = arith.constant 1.000000e+00 : f32
      %22 = vector.broadcast %cst_14 : f32 to vector<16x32xf32>
      %23 = arith.addf %22, %21 : vector<16x32xf32>
      %24 = arith.mulf %18, %23 : vector<16x32xf32>
      %cst_15 = arith.constant dense<0.000000e+00> : vector<16xf32>
      %25 = vector.multi_reduction <add>, %24, %cst_15 [1] : vector<16x32xf32> to vector<16xf32>
      %26 = vector.shape_cast %25 : vector<16xf32> to vector<16x1xf32>
      %27 = arith.mulf %24, %24 : vector<16x32xf32>
      %cst_16 = arith.constant dense<0.000000e+00> : vector<16xf32>
      %28 = vector.multi_reduction <add>, %27, %cst_16 [1] : vector<16x32xf32> to vector<16xf32>
      %29 = vector.shape_cast %28 : vector<16xf32> to vector<16x1xf32>
      %cst_17 = arith.constant 3.125000e-02 : f32
      %30 = vector.broadcast %cst_17 : f32 to vector<16x1xf32>
      %31 = arith.mulf %26, %30 : vector<16x1xf32>
      %cst_18 = arith.constant 3.125000e-02 : f32
      %32 = vector.broadcast %cst_18 : f32 to vector<16x1xf32>
      %33 = arith.mulf %29, %32 : vector<16x1xf32>
      %34 = arith.mulf %31, %31 : vector<16x1xf32>
      %35 = arith.subf %33, %34 : vector<16x1xf32>
      %cst_19 = arith.constant 0.000000e+00 : f32
      %36 = vector.broadcast %cst_19 : f32 to vector<16x1xf32>
      %37 = arith.maximumf %35, %36 : vector<16x1xf32>
      %38 = vector.broadcast %31 : vector<16x1xf32> to vector<16x32xf32>
      %39 = arith.subf %24, %38 : vector<16x32xf32>
      %cst_20 = arith.constant 9.99999996E-13 : f32
      %40 = vector.broadcast %cst_20 : f32 to vector<16x1xf32>
      %41 = arith.addf %37, %40 : vector<16x1xf32>
      %42 = math.rsqrt %41 : vector<16x1xf32>
      %43 = vector.broadcast %42 : vector<16x1xf32> to vector<16x32xf32>
      %44 = arith.mulf %39, %43 : vector<16x32xf32>
      %c0_21 = arith.constant 0 : index
      %c0_22 = arith.constant 0 : index
      %45 = vector.load %arg5[%c0_21, %c0_22] : memref<1x32xf32, #tpu.memory_space<vmem>>, vector<1x32xf32>
      %46 = vector.broadcast %45 : vector<1x32xf32> to vector<16x32xf32>
      %47 = arith.mulf %44, %46 : vector<16x32xf32>
      %c0_23 = arith.constant 0 : index
      %c0_24 = arith.constant 0 : index
      %48 = vector.load %arg6[%c0_23, %c0_24] : memref<1x32xf32, #tpu.memory_space<vmem>>, vector<1x32xf32>
      %49 = vector.broadcast %48 : vector<1x32xf32> to vector<16x32xf32>
      %50 = arith.addf %47, %49 : vector<16x32xf32>
      %c0_25 = arith.constant 0 : index
      %c0_26 = arith.constant 0 : index
      %51 = vector.load %arg7[%c0_25, %c0_26] : memref<16x32xf32, #tpu.memory_space<vmem>>, vector<16x32xf32>
      tpu.vector_store %arg7[%c0_25, %c0_26], %50 {strides = array<i32>} : memref<16x32xf32, #tpu.memory_space<vmem>>, vector<16x32xf32>,
    } else {
    }
    return
  }
  func.func @transform_0(%arg0: i32, %arg1: i32) -> (i32, i32) {
    %c0_i32 = arith.constant 0 : i32
    return %arg0, %arg1 : i32, i32
  }
  func.func @transform_1(%arg0: i32, %arg1: i32) -> (i32, i32) {
    %c0_i32 = arith.constant 0 : i32
    %c0_i32_0 = arith.constant 0 : i32
    return %arg1, %c0_i32 : i32, i32
  }
  func.func @transform_2(%arg0: i32, %arg1: i32) -> (i32, i32) {
    %c0_i32 = arith.constant 0 : i32
    %c0_i32_0 = arith.constant 0 : i32
    %c0_i32_1 = arith.constant 0 : i32
    return %c0_i32, %c0_i32_0 : i32, i32
  }
  func.func @transform_3(%arg0: i32, %arg1: i32) -> (i32, i32) {
    %c0_i32 = arith.constant 0 : i32
    %c0_i32_0 = arith.constant 0 : i32
    %c0_i32_1 = arith.constant 0 : i32
    return %c0_i32, %c0_i32_0 : i32, i32
  }
  func.func @transform_4(%arg0: i32, %arg1: i32) -> (i32, i32) {
    %c0_i32 = arith.constant 0 : i32
    %c0_i32_0 = arith.constant 0 : i32
    %c0_i32_1 = arith.constant 0 : i32
    return %c0_i32, %c0_i32_0 : i32, i32
  }
  func.func @transform_5(%arg0: i32, %arg1: i32) -> (i32, i32) {
    %c0_i32 = arith.constant 0 : i32
    %c0_i32_0 = arith.constant 0 : i32
    return %arg0, %c0_i32 : i32, i32
  }
}

</mosaic_0001>

<llo_original>
// kernel: decoder_transform.1
$region0: #{decoder_transform.1}
  #allocation0 [shape = 'u32[]', space=smem, size = 0x4, offset = 0x4, fixed_abs, tag = 'smem constant byte address 0x4 - core index']
  #allocation1 [shape = 'u32[144,128]{1,0:T(1,128)}', space=vmem, size = 0x12000, scoped, tag = 'internal scratch']
  #allocation2 [shape = 'f32[16,32]{1,0:T(8,128)}', space=vmem, size = 0x2000, scoped, tag = 'scratch operand']
  %s0 = inlined_call_operand.hbm [shape: f32[16,32], index: 0, kind: input, shape index: {}]
  %s1 = inlined_call_operand.hbm [shape: f32[32,32], index: 1, kind: input, shape index: {}]
  %s2 = inlined_call_operand.vmem [shape: f32[1,32], index: 2, kind: input, shape index: {}]
  %s3 = inlined_call_operand.vmem [shape: f32[1,32], index: 3, kind: input, shape index: {}]
  %s4 = inlined_call_operand.vmem [shape: f32[1,32], index: 4, kind: input, shape index: {}]
  %s5 = inlined_call_operand.hbm [shape: f32[16,32], index: 5, kind: output, shape index: {}]
  %s6 = sld [smem:[#allocation0]]
  $region50: #{decoder_transform.1} parent=0
    _
  %s8 = ssub.s32 1, %s6
  %s9 = scalar_select 0, %s8, %s6
  $region1: #{decoder_transform.1} parent=0
    #allocation3 [shape = 'u8[8192]{0}', space=vmem, size = 0x2000, scoped, tag = 'input window, operand 0, single buffered']
    #allocation4 [shape = 's32[1]{0}', space=sflag, size = 0x4, scoped, tag = 'scoped memory for decoder_transform.1']
    #allocation5 [shape = 's32[1]{0}', space=sflag, size = 0x4, scoped, tag = 'scoped memory for decoder_transform.1']
    #allocation6 [shape = 'u8[16384]{0}', space=vmem, size = 0x4000, scoped, tag = 'input window, operand 1, single buffered']
    #allocation7 [shape = 's32[1]{0}', space=sflag, size = 0x4, scoped, tag = 'scoped memory for decoder_transform.1']
    #allocation8 [shape = 'u8[8192]{0}', space=vmem, size = 0x2000, scoped, tag = 'output window, operand 0, single buffered']
    %10 = vsyncpa [#allocation4], 0
    %11 = vsyncpa [#allocation7], 0
    %12 = vsyncpa [#allocation5], 0
    // Predicated region
    $region2: #{decoder_transform.1} parent=1 // pred_check
      _
    $region3: #{decoder_transform.1} parent=1 // pred_check_branch
      %14 = sbr.rel (0) target = $region5
    $region4: #{decoder_transform.1} parent=1 // pred_region
      %s16 = ssub.s32 256, 256
      %17 = vsyncadd [#allocation4], %s16
      %s18 = sshll.u32 [#allocation3], 4
      %s19 = int_to_ptr.vmem [resolvable:$true] %s18
      %24 = dma.hbm_to_vmem [thread:$0]  %s0, 256, %s19, [#allocation4], 128, 128, 8
    $region5: #{decoder_transform.1} parent=1 // pred_fallthru
      _
    // Predicated region
    $region6: #{decoder_transform.1} parent=1 // pred_check
      _
    $region7: #{decoder_transform.1} parent=1 // pred_check_branch
      %26 = sbr.rel (0) target = $region9
    $region8: #{decoder_transform.1} parent=1 // pred_region
      %s28 = ssub.s32 512, 512
      %29 = vsyncadd [#allocation7], %s28
      %s30 = sshll.u32 [#allocation6], 4
      %s31 = int_to_ptr.vmem [resolvable:$true] %s30
      %36 = dma.hbm_to_vmem [thread:$0]  %s1, 512, %s31, [#allocation7], 128, 128, 8
    $region9: #{decoder_transform.1} parent=1 // pred_fallthru
      _
    // Predicated region
    $region10: #{decoder_transform.1} parent=1 // pred_check
      _
    $region11: #{decoder_transform.1} parent=1 // pred_check_branch
      %38 = sbr.rel (0) target = $region13
    $region12: #{decoder_transform.1} parent=1 // pred_region
      _
    $region13: #{decoder_transform.1} parent=1 // pred_fallthru
      _
    // Predicated region
    $region14: #{decoder_transform.1} parent=1 // pred_check
      _
    $region15: #{decoder_transform.1} parent=1 // pred_check_branch
      %40 = sbr.rel (0) target = $region17
    $region16: #{decoder_transform.1} parent=1 // pred_region
      _
    $region17: #{decoder_transform.1} parent=1 // pred_fallthru
      _
    // Predicated region
    $region18: #{decoder_transform.1} parent=1 // pred_check
      _
    $region19: #{decoder_transform.1} parent=1 // pred_check_branch
      %42 = sbr.rel (0) target = $region21
    $region20: #{decoder_transform.1} parent=1 // pred_region
      _
    $region21: #{decoder_transform.1} parent=1 // pred_fallthru
      _
    // Predicated region
    $region22: #{decoder_transform.1} parent=1 // pred_check
      _
    $region23: #{decoder_transform.1} parent=1 // pred_check_branch
      %44 = sbr.rel (0) target = $region25
    $region24: #{decoder_transform.1} parent=1 // pred_region
      %45 = dma.done [#allocation4], 256
    $region25: #{decoder_transform.1} parent=1 // pred_fallthru
      _
    // Predicated region
    $region26: #{decoder_transform.1} parent=1 // pred_check
      _
    $region27: #{decoder_transform.1} parent=1 // pred_check_branch
      %47 = sbr.rel (0) target = $region29
    $region28: #{decoder_transform.1} parent=1 // pred_region
      %48 = dma.done [#allocation7], 512
    $region29: #{decoder_transform.1} parent=1 // pred_fallthru
      _
    %p49 = scmp.eq.s32.totalorder 0, 0
    // Predicated region
    $region30: #{decoder_transform.1} parent=1 // pred_check
      %p50 = pneg %p49
    $region31: #{decoder_transform.1} parent=1 // pred_check_branch
      %52 = sbr.rel (%p50) target = $region33
    $region32: #{decoder_transform.1} parent=1 // pred_region
      %vm53 = vcmask 261120
      %54 = vst.msk [vmem:[#allocation2] sm:$0xff] %vm53, 0.0
      %55 = vst.msk [vmem:[#allocation2 + $0x8] sm:$0xff] %vm53, 0.0
    $region33: #{decoder_transform.1} parent=1 // pred_fallthru
      _
    %v56 = vld [vmem:[#allocation3] sm:$0xff]
    %v57 = vld [vmem:[#allocation3 + $0x8] sm:$0xff]
    %v58 = vld [vmem:[#allocation6] sm:$0xff]
    %v59 = vld [vmem:[#allocation6 + $0x8] sm:$0xff]
    %v60 = vld [vmem:[#allocation6 + $0x10] sm:$0xff]
    %v61 = vld [vmem:[#allocation6 + $0x18] sm:$0xff]
    %vm62 = vcmask 261120
    %v64 = vsel %vm62, %v56, 0
    %v67 = vsel %vm62, %v57, 0
    %69 = vmatprep.subr.mxu0 0.0
    %70 = vmatpush1.msra.mxu0 %v58
    %71 = vmatprep.subr.mxu0 0.0
    %72 = vmatpush1.msra.mxu0 %v59
    %73 = vmatprep.subr.mxu0 0.0
    %74 = vmatpush1.msra.mxu0 %v60
    %75 = vmatprep.subr.mxu0 0.0
    %76 = vmatpush1.msra.mxu0 %v61
    %77 = vmatprep.subr.mxu0 0.0
    %78 = vmatpush1.msra.mxu0 0.0
    %79 = vmatprep.subr.mxu0 0.0
    %80 = vmatpush1.msra.mxu0 0.0
    %81 = vmatprep.subr.mxu0 0.0
    %82 = vmatpush1.msra.mxu0 0.0
    %83 = vmatprep.subr.mxu0 0.0
    %84 = vmatpush1.msra.mxu0 0.0
    %85 = vmatprep.subr.mxu0 0.0
    %86 = vmatpush1.msra.mxu0 0.0
    %87 = vmatprep.subr.mxu0 0.0
    %88 = vmatpush1.msra.mxu0 0.0
    %89 = vmatprep.subr.mxu0 0.0
    %90 = vmatpush1.msra.mxu0 0.0
    %91 = vmatprep.subr.mxu0 0.0
    %92 = vmatpush1.msra.mxu0 0.0
    %93 = vmatprep.subr.mxu0 0.0
    %94 = vmatpush1.msra.mxu0 0.0
    %95 = vmatprep.subr.mxu0 0.0
    %96 = vmatpush1.msra.mxu0 0.0
    %97 = vmatprep.subr.mxu0 0.0
    %98 = vmatpush1.msra.mxu0 0.0
    %99 = vmatprep.subr.mxu0 0.0
    %100 = vmatpush1.msra.mxu0 0.0
    %101 = vmatprep.subr.mxu0 0.0
    %102 = vmatpush1.msra.mxu0 0.0
    %103 = vmatprep.subr.mxu0 0.0
    %104 = vmatpush1.msra.mxu0 0.0
    %105 = vmatprep.subr.mxu0 0.0
    %106 = vmatpush1.msra.mxu0 0.0
    %107 = vmatprep.subr.mxu0 0.0
    %108 = vmatpush1.msra.mxu0 0.0
    %109 = vmatprep.subr.mxu0 0.0
    %110 = vmatpush1.msra.mxu0 0.0
    %111 = vmatprep.subr.mxu0 0.0
    %112 = vmatpush1.msra.mxu0 0.0
    %113 = vmatprep.subr.mxu0 0.0
    %114 = vmatpush1.msra.mxu0 0.0
    %115 = vmatprep.subr.mxu0 0.0
    %116 = vmatpush1.msra.mxu0 0.0
    %117 = vmatprep.subr.mxu0 0.0
    %118 = vmatpush1.msra.mxu0 0.0
    %119 = vmatprep.subr.mxu0 0.0
    %120 = vmatpush1.msra.mxu0 0.0
    %121 = vmatprep.subr.mxu0 0.0
    %122 = vmatpush1.msra.mxu0 0.0
    %123 = vmatprep.subr.mxu0 0.0
    %124 = vmatpush1.msra.mxu0 0.0
    %125 = vmatprep.subr.mxu0 0.0
    %126 = vmatpush1.msra.mxu0 0.0
    %127 = vmatprep.subr.mxu0 0.0
    %128 = vmatpush1.msra.mxu0 0.0
    %129 = vmatprep.subr.mxu0 0.0
    %130 = vmatpush1.msra.mxu0 0.0
    %131 = vmatprep.subr.mxu0 0.0
    %132 = vmatpush1.msra.mxu0 0.0
    %133 = vmatprep.mubr.f32.mxu0 0.0
    %134 = vmatmul.mubr.f32.gmra.mrb[0].mxu0 %v64
    %v135 = vpop.f32.mrb[0].mxu0
    %v136 = vadd.f32 0.0, %v135
    %v137 = vpop.f32.mrb[0].mxu0
    %138 = vmatprep.mubr.f32.mxu0 0.0
    %139 = vmatmul.mubr.f32.gmra.mrb[0].mxu0 %v67
    %v140 = vpop.f32.mrb[0].mxu0
    %v141 = vadd.f32 0.0, %v140
    %v142 = vpop.f32.mrb[0].mxu0
    %143 = vdwg.mxu0
    %p144 = scmp.lt.s32.totalorder 0, 0
    // Predicated region
    $region34: #{decoder_transform.1} parent=1 // pred_check
      %p145 = pneg %p144
    $region35: #{decoder_transform.1} parent=1 // pred_check_branch
      %147 = sbr.rel (%p145) target = $region37
    $region36: #{decoder_transform.1} parent=1 // pred_region
      %v148 = vld [vmem:[#allocation2] sm:$0xff]
      %v149 = vld [vmem:[#allocation2 + $0x8] sm:$0xff]
      %v150 = vadd.f32 %v148, %v136
      %v151 = vadd.f32 %v149, %v141
      %152 = vst.msk [vmem:[#allocation2] sm:$0xff] %vm62, %v150
      %153 = vst.msk [vmem:[#allocation2 + $0x8] sm:$0xff] %vm62, %v151
    $region37: #{decoder_transform.1} parent=1 // pred_fallthru
      _
    // Predicated region
    $region38: #{decoder_transform.1} parent=1 // pred_check
      %p154 = pneg %p49
    $region39: #{decoder_transform.1} parent=1 // pred_check_branch
      %156 = sbr.rel (%p154) target = $region41
    $region40: #{decoder_transform.1} parent=1 // pred_region
      %v157 = vld [vmem:[#allocation2] sm:$0xff]
      %v158 = vld [vmem:[#allocation2 + $0x8] sm:$0xff]
      %v159 = vadd.f32 %v157, %v136
      %v160 = vadd.f32 %v158, %v141
      %v161 = vld [vmem:[%s2] sm:$0x1]
      %v163 = vlaneseq
      %v164 = vshrl.u32 %v163, 7
      %v165 = vsub.s32 0, %v164
      %v166 = vrot.slane %v161, %v165
      %v168 = vadd.f32 %v159, %v166
      %v169 = vadd.f32 %v160, %v166
      %v170 = vmul.f32 %v168, 0.5
      %v171 = vmul.f32 %v169, 0.5
      %v172 = vmul.f32 %v168, 0.70710677
      %v173 = vmul.f32 %v169, 0.70710677
      %v174 = verf.f32.pop %v172
      %v175 = verf.f32.pop %v173
      %v176 = vadd.f32 %v174, 1.0
      %v177 = vadd.f32 %v175, 1.0
      %v178 = vmul.f32 %v170, %v176
      %v179 = vmul.f32 %v171, %v177
      %v180 = vsel %vm62, %v178, 0.0
      %181 = vadd.xlane.f32.xlu0 %v180
      %v182 = vpop.xlane.xlu0 %181
      %v183 = vsel %vm62, %v179, 0.0
      %184 = vadd.xlane.f32.xlu0 %v183
      %v185 = vpop.xlane.xlu0 %184
      %v186 = vmul.f32 %v178, %v178
      %v187 = vmul.f32 %v179, %v179
      %v188 = vsel %vm62, %v186, 0.0
      %189 = vadd.xlane.f32.xlu0 %v188
      %v190 = vpop.xlane.xlu0 %189
      %v191 = vsel %vm62, %v187, 0.0
      %192 = vadd.xlane.f32.xlu0 %v191
      %v193 = vpop.xlane.xlu0 %192
      %v194 = vmul.f32 %v182, 0.03125
      %v195 = vmul.f32 %v185, 0.03125
      %v196 = vmul.f32 %v190, 0.03125
      %v197 = vmul.f32 %v193, 0.03125
      %v198 = vmul.f32 %v194, %v194
      %v199 = vmul.f32 %v195, %v195
      %v200 = vsub.f32 %v196, %v198
      %v201 = vsub.f32 %v197, %v199
      %v202 = vmax.f32 %v200, 0.0
      %v203 = vmax.f32 %v201, 0.0
      %v204 = vsub.f32 %v178, %v194
      %v205 = vsub.f32 %v179, %v195
      %v206 = vadd.f32 %v202, 1e-12
      %v207 = vadd.f32 %v203, 1e-12
      %v208 = vrsqrt.pop %v206
      %v209 = vrsqrt.pop %v207
      %v210 = vmul.f32 %v204, %v208
      %v211 = vmul.f32 %v205, %v209
      %v212 = vld [vmem:[%s3] sm:$0x1]
      %v214 = vlaneseq
      %v215 = vshrl.u32 %v214, 7
      %v216 = vsub.s32 0, %v215
      %v217 = vrot.slane %v212, %v216
      %v219 = vmul.f32 %v210, %v217
      %v220 = vmul.f32 %v211, %v217
      %v221 = vld [vmem:[%s4] sm:$0x1]
      %v223 = vlaneseq
      %v224 = vshrl.u32 %v223, 7
      %v225 = vsub.s32 0, %v224
      %v226 = vrot.slane %v221, %v225
      %v228 = vadd.f32 %v219, %v226
      %v229 = vadd.f32 %v220, %v226
      %230 = vst.msk [vmem:[#allocation8] sm:$0xff] %vm62, %v228
      %231 = vst.msk [vmem:[#allocation8 + $0x8] sm:$0xff] %vm62, %v229
    $region41: #{decoder_transform.1} parent=1 // pred_fallthru
      _
    // Predicated region
    $region42: #{decoder_transform.1} parent=1 // pred_check
      _
    $region43: #{decoder_transform.1} parent=1 // pred_check_branch
      %233 = sbr.rel (0) target = $region45
    $region44: #{decoder_transform.1} parent=1 // pred_region
      %s235 = ssub.s32 256, 256
      %236 = vsyncadd [#allocation5], %s235
      %s237 = sshll.u32 [#allocation8], 4
      %s238 = int_to_ptr.vmem [resolvable:$true] %s237
      %243 = dma.vmem_to_hbm [thread:$0]  %s238, 256, %s5, [#allocation5], 128, 128, 8
    $region45: #{decoder_transform.1} parent=1 // pred_fallthru
      _
    // Predicated region
    $region46: #{decoder_transform.1} parent=1 // pred_check
      _
    $region47: #{decoder_transform.1} parent=1 // pred_check_branch
      %245 = sbr.rel (0) target = $region49
    $region48: #{decoder_transform.1} parent=1 // pred_region
      %246 = dma.done [#allocation5], 256
    $region49: #{decoder_transform.1} parent=1 // pred_fallthru
      _
    %247 = vsyncpa [#allocation4], 1
    %248 = vsyncpa [#allocation7], 1
    %249 = vsyncpa [#allocation5], 1

</llo_original>
